<compile_context>
chip_gen: v6e
topology: v6e:2x2x1
jax: 0.10.0
libtpu: 0.0.40
codegen_flags: <defaults>
</compile_context>

<pallas_src>
import functools
import math

import jax
import jax.numpy as jnp
from jax.experimental import pallas as pl
from jax.experimental.pallas import tpu as pltpu

NEG_INF = -1e30  # finite "-inf": avoids inf-inf NaNs in the online softmax


def _round_up(n, m):
    return ((n + m - 1) // m) * m


def _vmem_limit_bytes():
    """Per-generation scoped-VMEM cap with headroom (v7x has only 64 MiB physical)."""
    try:
        cap = int(pltpu.get_tpu_info().vmem_capacity_bytes)
    except Exception:
        cap = 64 * 1024 * 1024  # assume the smallest generation (v7x)
    return min(int(cap * 0.7), 100 * 1024 * 1024)


def _kv_tile(blk_q, t_padded):
    """256-wide kv tiles fill the 2x256x256 MXU on v6e/v7x; keep 128 on v5e/v4."""
    if blk_q != 128 or t_padded % 256 != 0:
        return blk_q
    try:
        kind = jax.devices()[0].device_kind.lower()
    except Exception:
        kind = ""
    wide_mxu = any(tag in kind for tag in ("v6", "v7", "7x"))
    return 256 if wide_mxu else blk_q


# --------------------------------------------------------------------------- #
# Kernel 1: QKV projection (bf16 MXU matmul, f32 accumulate, head-major out)
# --------------------------------------------------------------------------- #
def _qkv_proj_kernel(x_ref, wq_ref, wk_ref, wv_ref, bq_ref, bk_ref, bv_ref,
                     q_ref, k_ref, v_ref, *, n_head, head_dim, scale):
    """x_ref: [1, tq, C] bf16; w*_ref: [C, C] bf16; b*_ref: [1, C] f32.
    Outputs q/k/v: [1, H, tq, D] bf16 (q pre-scaled by 1/sqrt(D))."""
    x = x_ref[0]                                             # [tq, C] bf16

    def project(w_ref, b_ref, out_ref, s):
        # One [tq,C]x[C,C] dot at a time: bounded f32 live range, no [tq,3C].
        r = jnp.dot(x, w_ref[...], preferred_element_type=jnp.float32)
        r = r + b_ref[...]
        if s is not None:
            r = r * s
        r = r.astype(out_ref.dtype)                          # [tq, C] bf16
        # Head-major store (static slices): replaces the XLA reshape+transpose.
        for h in range(n_head):
            out_ref[0, h] = r[:, h * head_dim:(h + 1) * head_dim]

    project(wq_ref, bq_ref, q_ref, scale)                    # q pre-scaled
    project(wk_ref, bk_ref, k_ref, None)
    project(wv_ref, bv_ref, v_ref, None)


# --------------------------------------------------------------------------- #
# Kernel 2: flash attention with online softmax (causal)
# --------------------------------------------------------------------------- #
def _flash_attn_kernel(q_ref, k_ref, v_ref, o_ref, m_sc, l_sc, acc_sc, *,
                       blk_q, blk_kv):
    """q_ref: [1,1,tq,D] bf16 (pre-scaled); k/v_ref: [1,1,tkv,D] bf16.
    o_ref: [1,1,tq,D] bf16. Scratch: m/l [tq,1] f32, acc [tq,D] f32."""
    qi = pl.program_id(2)
    ki = pl.program_id(3)

    q_start = qi * blk_q
    q_end = q_start + (blk_q - 1)
    kv_start = ki * blk_kv
    kv_end = kv_start + (blk_kv - 1)

    @pl.when(ki == 0)
    def _init():
        m_sc[...] = jnp.full_like(m_sc, NEG_INF)
        l_sc[...] = jnp.zeros_like(l_sc)
        acc_sc[...] = jnp.zeros_like(acc_sc)

    def _accumulate(masked):
        q = q_ref[0, 0]                                      # [tq, D]  bf16
        k = k_ref[0, 0]                                      # [tkv, D] bf16
        v = v_ref[0, 0]                                      # [tkv, D] bf16

        s = jax.lax.dot_general(q, k, (((1,), (1,)), ((), ())),
                                preferred_element_type=jnp.float32)  # [tq, tkv]
        if masked:  # only diagonal tiles pay for the iota/compare/select
            row = jax.lax.broadcasted_iota(jnp.int32, (blk_q, blk_kv), 0) + q_start
            col = jax.lax.broadcasted_iota(jnp.int32, (blk_q, blk_kv), 1) + kv_start
            s = jnp.where(row >= col, s, NEG_INF)

        m_prev = m_sc[...]                                   # [tq, 1]
        m_new = jnp.maximum(m_prev, jnp.max(s, axis=-1, keepdims=True))
        alpha = jnp.exp(m_prev - m_new)                      # EUP
        p = jnp.exp(s - m_new)                               # [tq, tkv] f32

        l_sc[...] = alpha * l_sc[...] + jnp.sum(p, axis=-1, keepdims=True)
        acc_sc[...] = alpha * acc_sc[...] + jnp.dot(
            p.astype(v.dtype), v, preferred_element_type=jnp.float32)
        m_sc[...] = m_new

    fully_visible = kv_end <= q_start       # interior tile: no mask needed
    contributes = kv_start <= q_end         # intersects or below the diagonal

    @pl.when(fully_visible)
    def _interior():
        _accumulate(masked=False)

    @pl.when(jnp.logical_and(contributes, jnp.logical_not(fully_visible)))
    def _diagonal():
        _accumulate(masked=True)

    # Deferred softmax normalization at the last contributing kv tile.
    last_valid = q_end // blk_kv
    @pl.when(ki == last_valid)
    def _finalize():
        inv_l = pl.reciprocal(l_sc[...], approx=True)
        o_ref[0, 0] = (acc_sc[...] * inv_l).astype(o_ref.dtype)


# --------------------------------------------------------------------------- #
# Wrapper
# --------------------------------------------------------------------------- #
def self_attention(x, w_qkv_t, b_qkv, *, n_head):
    """x: [B,T,C] (or [T,C]); w_qkv_t: [C,3C] (PyTorch weight transposed); b_qkv: [3C]."""
    if x.ndim == 2:  # PyTorch module also supports the 2-D path
        return self_attention(x[None], w_qkv_t, b_qkv, n_head=n_head)[0]

    B, T, C = x.shape
    assert C % n_head == 0
    D = C // n_head
    out_dtype = x.dtype
    scale = 1.0 / math.sqrt(D)

    # Tile sizes: pad T to the tile, never fall back to a full-T score tile.
    blk_q = 128 if T >= 128 else _round_up(T, 8)
    Tp = _round_up(T, blk_q)
    blk_kv = _kv_tile(blk_q, Tp)
    nq, nkv = Tp // blk_q, Tp // blk_kv
    vmem_limit = _vmem_limit_bytes()

    x_p = x if Tp == T else jnp.pad(x, ((0, 0), (0, Tp - T), (0, 0)))
    x_bf = x_p.astype(jnp.bfloat16)

    # Parameter prep (one-time, tiny): per-output weight slices + f32 biases.
    w = w_qkv_t.astype(jnp.bfloat16)
    wq, wk, wv = w[:, 0:C], w[:, C:2 * C], w[:, 2 * C:3 * C]
    b = b_qkv.astype(jnp.float32)
    bq = b[0:C].reshape(1, C)
    bk = b[C:2 * C].reshape(1, C)
    bv = b[2 * C:3 * C].reshape(1, C)

    # ---- 1) QKV projection -> head-major [B, H, Tp, D] -----------------------
    qh, kh, vh = pl.pallas_call(
        functools.partial(_qkv_proj_kernel, n_head=n_head, head_dim=D, scale=scale),
        out_shape=(jax.ShapeDtypeStruct((B, n_head, Tp, D), jnp.bfloat16),) * 3,
        grid_spec=pltpu.PrefetchScalarGridSpec(
            num_scalar_prefetch=0,
            grid=(B, nq),
            in_specs=[
                pl.BlockSpec((1, blk_q, C), lambda b, i: (b, i, 0)),   # x tile
                pl.BlockSpec((C, C), lambda b, i: (0, 0)),             # w_q
                pl.BlockSpec((C, C), lambda b, i: (0, 0)),             # w_k
                pl.BlockSpec((C, C), lambda b, i: (0, 0)),             # w_v
                pl.BlockSpec((1, C), lambda b, i: (0, 0)),             # b_q
                pl.BlockSpec((1, C), lambda b, i: (0, 0)),             # b_k
                pl.BlockSpec((1, C), lambda b, i: (0, 0)),             # b_v
            ],
            out_specs=(
                pl.BlockSpec((1, n_head, blk_q, D), lambda b, i: (b, 0, i, 0)),
            ) * 3,
        ),
        compiler_params=pltpu.CompilerParams(
            dimension_semantics=("parallel", "parallel"),
            vmem_limit_bytes=vmem_limit,
        ),
    )(x_bf, wq, wk, wv, bq, bk, bv)

    # ---- 2) causal flash attention -------------------------------------------
    def qo_index_map(b, h, qi, ki):
        return (b, h, qi, 0)

    def kv_index_map(b, h, qi, ki):
        # Clamp above-diagonal steps to the last contributing block: the block
        # index is unchanged there, so Pallas elides the K/V DMA entirely.
        last_valid = (qi * blk_q + blk_q - 1) // blk_kv
        return (b, h, jnp.minimum(ki, last_valid), 0)

    kv_refetch = max(1, (nq + 1) // 2)
    cost = pl.CostEstimate(
        flops=int(2 * B * n_head * Tp * Tp * D),               # causal ~half
        transcendentals=int(B * n_head * Tp * Tp // 2),
        bytes_accessed=int(B * n_head * Tp * D * 2 * (2 + 2 * kv_refetch)),
    )

    y = pl.pallas_call(
        functools.partial(_flash_attn_kernel, blk_q=blk_q, blk_kv=blk_kv),
        out_shape=jax.ShapeDtypeStruct((B, n_head, Tp, D), jnp.bfloat16),
        grid_spec=pltpu.PrefetchScalarGridSpec(
            num_scalar_prefetch=0,
            grid=(B, n_head, nq, nkv),
            in_specs=[
                pl.BlockSpec((1, 1, blk_q, D), qo_index_map),
                pl.BlockSpec((1, 1, blk_kv, D), kv_index_map),
                pl.BlockSpec((1, 1, blk_kv, D), kv_index_map),
            ],
            out_specs=pl.BlockSpec((1, 1, blk_q, D), qo_index_map),
            scratch_shapes=[
                pltpu.VMEM((blk_q, 1), jnp.float32),   # m (running max)
                pltpu.VMEM((blk_q, 1), jnp.float32),   # l (running sum)
                pltpu.VMEM((blk_q, D), jnp.float32),   # acc (unnormalized out)
            ],
        ),
        compiler_params=pltpu.CompilerParams(
            dimension_semantics=("parallel", "parallel", "parallel", "arbitrary"),
            vmem_limit_bytes=vmem_limit,
        ),
        cost_estimate=cost,
    )(qh, kh, vh)

    # [B, H, Tp, D] -> [B, T, C]; the only remaining layout pass, in bf16.
    y = y[:, :, :T, :].transpose(0, 2, 1, 3).reshape(B, T, C)
    return y.astype(out_dtype)


# --------------------------------------------------------------------------- #
# Pure-JAX reference mirroring the PyTorch forward path
# --------------------------------------------------------------------------- #
def self_attention_ref(x, w_qkv_t, b_qkv, *, n_head):
    B, T, C = x.shape
    D = C // n_head
    qkv = x @ w_qkv_t + b_qkv
    q, k, v = jnp.split(qkv, 3, axis=-1)
    q = q.reshape(B, T, n_head, D).transpose(0, 2, 1, 3)
    k = k.reshape(B, T, n_head, D).transpose(0, 2, 1, 3)
    v = v.reshape(B, T, n_head, D).transpose(0, 2, 1, 3)
    s = jnp.einsum("bhqd,bhkd->bhqk", q, k) / math.sqrt(D)
    mask = jnp.tril(jnp.ones((T, T), dtype=bool))
    s = jnp.where(mask, s, -jnp.inf)
    p = jax.nn.softmax(s, axis=-1)
    y = jnp.einsum("bhqk,bhkd->bhqd", p, v)
    return y.transpose(0, 2, 1, 3).reshape(B, T, C)


if __name__ == "__main__":
    # Small shapes consistent with the module.
    B, T, n_embd, n_head = 2, 8, 32, 4

    key = jax.random.PRNGKey(0)
    kx, kw, kb = jax.random.split(key, 3)

    x = jax.random.normal(kx, (B, T, n_embd), dtype=jnp.float32)

    # "Linear" parameters (PyTorch weight is [3C, C]; we store transposed [C, 3C]).
    bound = 1.0 / math.sqrt(n_embd)
    w_qkv = jax.random.uniform(kw, (3 * n_embd, n_embd), minval=-bound, maxval=bound,
                               dtype=jnp.float32)
    b_qkv = jax.random.uniform(kb, (3 * n_embd,), minval=-bound, maxval=bound,
                               dtype=jnp.float32)
    w_qkv_t = w_qkv.T

    # self.fc exists in __init__ but is never applied in forward — omitted.

    y = self_attention(x, w_qkv_t, b_qkv, n_head=n_head)
    y = jax.block_until_ready(y)

    y_ref = self_attention_ref(x, w_qkv_t, b_qkv, n_head=n_head)
    assert y.shape == (B, T, n_embd)
    err = float(jnp.max(jnp.abs(y - y_ref)))
    # bf16 MXU inputs and bf16 output => loosened tolerance vs pure-f32 reference.
    assert err < 5e-2, f"mismatch vs reference (max abs err {err})"

    print("KERNEL_OK")
</pallas_src>

<mosaic_0001>
module attributes {stable_mosaic.version = 11 : i64} {
  func.func @_qkv_proj_kernel(%arg0: i32, %arg1: i32, %arg2: memref<1x8x32xbf16, #tpu.memory_space<vmem>>, %arg3: memref<32x32xbf16, #tpu.memory_space<vmem>>, %arg4: memref<32x32xbf16, #tpu.memory_space<vmem>>, %arg5: memref<32x32xbf16, #tpu.memory_space<vmem>>, %arg6: memref<1x32xf32, #tpu.memory_space<vmem>>, %arg7: memref<1x32xf32, #tpu.memory_space<vmem>>, %arg8: memref<1x32xf32, #tpu.memory_space<vmem>>, %arg9: memref<1x4x8x8xbf16, #tpu.memory_space<vmem>>, %arg10: memref<1x4x8x8xbf16, #tpu.memory_space<vmem>>, %arg11: memref<1x4x8x8xbf16, #tpu.memory_space<vmem>>) attributes {dimension_semantics = [#tpu.dimension_semantics<parallel>, #tpu.dimension_semantics<parallel>], iteration_bounds = array<i64: 2, 1>, scalar_prefetch = 0 : i64, scratch_operands = 0 : i64, tpu.core_type = #tpu.core_type<tc>, window_params = [{transform_indices = @transform_0, window_bounds = array<i64: 1, 8, 32>}, {pipeline_mode = #tpu.pipeline_mode<synchronous>, transform_indices = @transform_1, window_bounds = array<i64: 32, 32>}, {pipeline_mode = #tpu.pipeline_mode<synchronous>, transform_indices = @transform_2, window_bounds = array<i64: 32, 32>}, {pipeline_mode = #tpu.pipeline_mode<synchronous>, transform_indices = @transform_3, window_bounds = array<i64: 32, 32>}, {pipeline_mode = #tpu.pipeline_mode<synchronous>, transform_indices = @transform_4, window_bounds = array<i64: 1, 32>}, {pipeline_mode = #tpu.pipeline_mode<synchronous>, transform_indices = @transform_5, window_bounds = array<i64: 1, 32>}, {pipeline_mode = #tpu.pipeline_mode<synchronous>, transform_indices = @transform_6, window_bounds = array<i64: 1, 32>}, {transform_indices = @transform_7, window_bounds = array<i64: 1, 4, 8, 8>}, {transform_indices = @transform_8, window_bounds = array<i64: 1, 4, 8, 8>}, {transform_indices = @transform_9, window_bounds = array<i64: 1, 4, 8, 8>}]} {
    %c0 = arith.constant 0 : index
    %c0_0 = arith.constant 0 : index
    %c0_1 = arith.constant 0 : index
    %0 = vector.load %arg2[%c0, %c0_0, %c0_1] : memref<1x8x32xbf16, #tpu.memory_space<vmem>>, vector<1x8x32xbf16>
    %1 = vector.shape_cast %0 : vector<1x8x32xbf16> to vector<8x32xbf16>
    %c0_2 = arith.constant 0 : index
    %c0_3 = arith.constant 0 : index
    %2 = vector.load %arg3[%c0_2, %c0_3] : memref<32x32xbf16, #tpu.memory_space<vmem>>, vector<32x32xbf16>
    %cst = arith.constant dense<0.000000e+00> : vector<8x32xf32>
    %3 = tpu.matmul %1, %2, %cst {dimension_numbers = #tpu.dot_dimension_numbers<[1], [0], [0], [1], [0, 0, 1, 1], [], []>} : vector<8x32xbf16>, vector<32x32xbf16>, vector<8x32xf32> -> vector<8x32xf32>
    %c0_4 = arith.constant 0 : index
    %c0_5 = arith.constant 0 : index
    %4 = vector.load %arg6[%c0_4, %c0_5] : memref<1x32xf32, #tpu.memory_space<vmem>>, vector<1x32xf32>
    %5 = vector.broadcast %4 : vector<1x32xf32> to vector<8x32xf32>
    %6 = arith.addf %3, %5 : vector<8x32xf32>
    %cst_6 = arith.constant 0.353553385 : f32
    %7 = vector.broadcast %cst_6 : f32 to vector<8x32xf32>
    %8 = arith.mulf %6, %7 : vector<8x32xf32>
    %9 = arith.truncf %8 : vector<8x32xf32> to vector<8x32xbf16>
    %10 = vector.extract_strided_slice %9 {offsets = [0, 0], sizes = [8, 8], strides = [1, 1]} : vector<8x32xbf16> to vector<8x8xbf16>
    %c0_7 = arith.constant 0 : index
    %c0_8 = arith.constant 0 : index
    %c0_9 = arith.constant 0 : index
    %c0_10 = arith.constant 0 : index
    %11 = vector.load %arg9[%c0_7, %c0_8, %c0_9, %c0_10] : memref<1x4x8x8xbf16, #tpu.memory_space<vmem>>, vector<1x1x8x8xbf16>
    %12 = vector.shape_cast %11 : vector<1x1x8x8xbf16> to vector<8x8xbf16>
    %13 = vector.shape_cast %10 : vector<8x8xbf16> to vector<1x1x8x8xbf16>
    tpu.vector_store %arg9[%c0_7, %c0_8, %c0_9, %c0_10], %13 {strides = array<i32>} : memref<1x4x8x8xbf16, #tpu.memory_space<vmem>>, vector<1x1x8x8xbf16>,
    %14 = vector.extract_strided_slice %9 {offsets = [0, 8], sizes = [8, 8], strides = [1, 1]} : vector<8x32xbf16> to vector<8x8xbf16>
    %c0_11 = arith.constant 0 : index
    %c1 = arith.constant 1 : index
    %c0_12 = arith.constant 0 : index
    %c0_13 = arith.constant 0 : index
    %15 = vector.load %arg9[%c0_11, %c1, %c0_12, %c0_13] : memref<1x4x8x8xbf16, #tpu.memory_space<vmem>>, vector<1x1x8x8xbf16>
    %16 = vector.shape_cast %15 : vector<1x1x8x8xbf16> to vector<8x8xbf16>
    %17 = vector.shape_cast %14 : vector<8x8xbf16> to vector<1x1x8x8xbf16>
    tpu.vector_store %arg9[%c0_11, %c1, %c0_12, %c0_13], %17 {strides = array<i32>} : memref<1x4x8x8xbf16, #tpu.memory_space<vmem>>, vector<1x1x8x8xbf16>,
    %18 = vector.extract_strided_slice %9 {offsets = [0, 16], sizes = [8, 8], strides = [1, 1]} : vector<8x32xbf16> to vector<8x8xbf16>
    %c0_14 = arith.constant 0 : index
    %c2 = arith.constant 2 : index
    %c0_15 = arith.constant 0 : index
    %c0_16 = arith.constant 0 : index
    %19 = vector.load %arg9[%c0_14, %c2, %c0_15, %c0_16] : memref<1x4x8x8xbf16, #tpu.memory_space<vmem>>, vector<1x1x8x8xbf16>
    %20 = vector.shape_cast %19 : vector<1x1x8x8xbf16> to vector<8x8xbf16>
    %21 = vector.shape_cast %18 : vector<8x8xbf16> to vector<1x1x8x8xbf16>
    tpu.vector_store %arg9[%c0_14, %c2, %c0_15, %c0_16], %21 {strides = array<i32>} : memref<1x4x8x8xbf16, #tpu.memory_space<vmem>>, vector<1x1x8x8xbf16>,
    %22 = vector.extract_strided_slice %9 {offsets = [0, 24], sizes = [8, 8], strides = [1, 1]} : vector<8x32xbf16> to vector<8x8xbf16>
    %c0_17 = arith.constant 0 : index
    %c3 = arith.constant 3 : index
    %c0_18 = arith.constant 0 : index
    %c0_19 = arith.constant 0 : index
    %23 = vector.load %arg9[%c0_17, %c3, %c0_18, %c0_19] : memref<1x4x8x8xbf16, #tpu.memory_space<vmem>>, vector<1x1x8x8xbf16>
    %24 = vector.shape_cast %23 : vector<1x1x8x8xbf16> to vector<8x8xbf16>
    %25 = vector.shape_cast %22 : vector<8x8xbf16> to vector<1x1x8x8xbf16>
    tpu.vector_store %arg9[%c0_17, %c3, %c0_18, %c0_19], %25 {strides = array<i32>} : memref<1x4x8x8xbf16, #tpu.memory_space<vmem>>, vector<1x1x8x8xbf16>,
    %c0_20 = arith.constant 0 : index
    %c0_21 = arith.constant 0 : index
    %26 = vector.load %arg4[%c0_20, %c0_21] : memref<32x32xbf16, #tpu.memory_space<vmem>>, vector<32x32xbf16>
    %cst_22 = arith.constant dense<0.000000e+00> : vector<8x32xf32>
    %27 = tpu.matmul %1, %26, %cst_22 {dimension_numbers = #tpu.dot_dimension_numbers<[1], [0], [0], [1], [0, 0, 1, 1], [], []>} : vector<8x32xbf16>, vector<32x32xbf16>, vector<8x32xf32> -> vector<8x32xf32>
    %c0_23 = arith.constant 0 : index
    %c0_24 = arith.constant 0 : index
    %28 = vector.load %arg7[%c0_23, %c0_24] : memref<1x32xf32, #tpu.memory_space<vmem>>, vector<1x32xf32>
    %29 = vector.broadcast %28 : vector<1x32xf32> to vector<8x32xf32>
    %30 = arith.addf %27, %29 : vector<8x32xf32>
    %31 = arith.truncf %30 : vector<8x32xf32> to vector<8x32xbf16>
    %32 = vector.extract_strided_slice %31 {offsets = [0, 0], sizes = [8, 8], strides = [1, 1]} : vector<8x32xbf16> to vector<8x8xbf16>
    %c0_25 = arith.constant 0 : index
    %c0_26 = arith.constant 0 : index
    %c0_27 = arith.constant 0 : index
    %c0_28 = arith.constant 0 : index
    %33 = vector.load %arg10[%c0_25, %c0_26, %c0_27, %c0_28] : memref<1x4x8x8xbf16, #tpu.memory_space<vmem>>, vector<1x1x8x8xbf16>
    %34 = vector.shape_cast %33 : vector<1x1x8x8xbf16> to vector<8x8xbf16>
    %35 = vector.shape_cast %32 : vector<8x8xbf16> to vector<1x1x8x8xbf16>
    tpu.vector_store %arg10[%c0_25, %c0_26, %c0_27, %c0_28], %35 {strides = array<i32>} : memref<1x4x8x8xbf16, #tpu.memory_space<vmem>>, vector<1x1x8x8xbf16>,
    %36 = vector.extract_strided_slice %31 {offsets = [0, 8], sizes = [8, 8], strides = [1, 1]} : vector<8x32xbf16> to vector<8x8xbf16>
    %c0_29 = arith.constant 0 : index
    %c1_30 = arith.constant 1 : index
    %c0_31 = arith.constant 0 : index
    %c0_32 = arith.constant 0 : index
    %37 = vector.load %arg10[%c0_29, %c1_30, %c0_31, %c0_32] : memref<1x4x8x8xbf16, #tpu.memory_space<vmem>>, vector<1x1x8x8xbf16>
    %38 = vector.shape_cast %37 : vector<1x1x8x8xbf16> to vector<8x8xbf16>
    %39 = vector.shape_cast %36 : vector<8x8xbf16> to vector<1x1x8x8xbf16>
    tpu.vector_store %arg10[%c0_29, %c1_30, %c0_31, %c0_32], %39 {strides = array<i32>} : memref<1x4x8x8xbf16, #tpu.memory_space<vmem>>, vector<1x1x8x8xbf16>,
    %40 = vector.extract_strided_slice %31 {offsets = [0, 16], sizes = [8, 8], strides = [1, 1]} : vector<8x32xbf16> to vector<8x8xbf16>
    %c0_33 = arith.constant 0 : index
    %c2_34 = arith.constant 2 : index
    %c0_35 = arith.constant 0 : index
    %c0_36 = arith.constant 0 : index
    %41 = vector.load %arg10[%c0_33, %c2_34, %c0_35, %c0_36] : memref<1x4x8x8xbf16, #tpu.memory_space<vmem>>, vector<1x1x8x8xbf16>
    %42 = vector.shape_cast %41 : vector<1x1x8x8xbf16> to vector<8x8xbf16>
    %43 = vector.shape_cast %40 : vector<8x8xbf16> to vector<1x1x8x8xbf16>
    tpu.vector_store %arg10[%c0_33, %c2_34, %c0_35, %c0_36], %43 {strides = array<i32>} : memref<1x4x8x8xbf16, #tpu.memory_space<vmem>>, vector<1x1x8x8xbf16>,
    %44 = vector.extract_strided_slice %31 {offsets = [0, 24], sizes = [8, 8], strides = [1, 1]} : vector<8x32xbf16> to vector<8x8xbf16>
    %c0_37 = arith.constant 0 : index
    %c3_38 = arith.constant 3 : index
    %c0_39 = arith.constant 0 : index
    %c0_40 = arith.constant 0 : index
    %45 = vector.load %arg10[%c0_37, %c3_38, %c0_39, %c0_40] : memref<1x4x8x8xbf16, #tpu.memory_space<vmem>>, vector<1x1x8x8xbf16>
    %46 = vector.shape_cast %45 : vector<1x1x8x8xbf16> to vector<8x8xbf16>
    %47 = vector.shape_cast %44 : vector<8x8xbf16> to vector<1x1x8x8xbf16>
    tpu.vector_store %arg10[%c0_37, %c3_38, %c0_39, %c0_40], %47 {strides = array<i32>} : memref<1x4x8x8xbf16, #tpu.memory_space<vmem>>, vector<1x1x8x8xbf16>,
    %c0_41 = arith.constant 0 : index
    %c0_42 = arith.constant 0 : index
    %48 = vector.load %arg5[%c0_41, %c0_42] : memref<32x32xbf16, #tpu.memory_space<vmem>>, vector<32x32xbf16>
    %cst_43 = arith.constant dense<0.000000e+00> : vector<8x32xf32>
    %49 = tpu.matmul %1, %48, %cst_43 {dimension_numbers = #tpu.dot_dimension_numbers<[1], [0], [0], [1], [0, 0, 1, 1], [], []>} : vector<8x32xbf16>, vector<32x32xbf16>, vector<8x32xf32> -> vector<8x32xf32>
    %c0_44 = arith.constant 0 : index
    %c0_45 = arith.constant 0 : index
    %50 = vector.load %arg8[%c0_44, %c0_45] : memref<1x32xf32, #tpu.memory_space<vmem>>, vector<1x32xf32>
    %51 = vector.broadcast %50 : vector<1x32xf32> to vector<8x32xf32>
    %52 = arith.addf %49, %51 : vector<8x32xf32>
    %53 = arith.truncf %52 : vector<8x32xf32> to vector<8x32xbf16>
    %54 = vector.extract_strided_slice %53 {offsets = [0, 0], sizes = [8, 8], strides = [1, 1]} : vector<8x32xbf16> to vector<8x8xbf16>
    %c0_46 = arith.constant 0 : index
    %c0_47 = arith.constant 0 : index
    %c0_48 = arith.constant 0 : index
    %c0_49 = arith.constant 0 : index
    %55 = vector.load %arg11[%c0_46, %c0_47, %c0_48, %c0_49] : memref<1x4x8x8xbf16, #tpu.memory_space<vmem>>, vector<1x1x8x8xbf16>
    %56 = vector.shape_cast %55 : vector<1x1x8x8xbf16> to vector<8x8xbf16>
    %57 = vector.shape_cast %54 : vector<8x8xbf16> to vector<1x1x8x8xbf16>
    tpu.vector_store %arg11[%c0_46, %c0_47, %c0_48, %c0_49], %57 {strides = array<i32>} : memref<1x4x8x8xbf16, #tpu.memory_space<vmem>>, vector<1x1x8x8xbf16>,
    %58 = vector.extract_strided_slice %53 {offsets = [0, 8], sizes = [8, 8], strides = [1, 1]} : vector<8x32xbf16> to vector<8x8xbf16>
    %c0_50 = arith.constant 0 : index
    %c1_51 = arith.constant 1 : index
    %c0_52 = arith.constant 0 : index
    %c0_53 = arith.constant 0 : index
    %59 = vector.load %arg11[%c0_50, %c1_51, %c0_52, %c0_53] : memref<1x4x8x8xbf16, #tpu.memory_space<vmem>>, vector<1x1x8x8xbf16>
    %60 = vector.shape_cast %59 : vector<1x1x8x8xbf16> to vector<8x8xbf16>
    %61 = vector.shape_cast %58 : vector<8x8xbf16> to vector<1x1x8x8xbf16>
    tpu.vector_store %arg11[%c0_50, %c1_51, %c0_52, %c0_53], %61 {strides = array<i32>} : memref<1x4x8x8xbf16, #tpu.memory_space<vmem>>, vector<1x1x8x8xbf16>,
    %62 = vector.extract_strided_slice %53 {offsets = [0, 16], sizes = [8, 8], strides = [1, 1]} : vector<8x32xbf16> to vector<8x8xbf16>
    %c0_54 = arith.constant 0 : index
    %c2_55 = arith.constant 2 : index
    %c0_56 = arith.constant 0 : index
    %c0_57 = arith.constant 0 : index
    %63 = vector.load %arg11[%c0_54, %c2_55, %c0_56, %c0_57] : memref<1x4x8x8xbf16, #tpu.memory_space<vmem>>, vector<1x1x8x8xbf16>
    %64 = vector.shape_cast %63 : vector<1x1x8x8xbf16> to vector<8x8xbf16>
    %65 = vector.shape_cast %62 : vector<8x8xbf16> to vector<1x1x8x8xbf16>
    tpu.vector_store %arg11[%c0_54, %c2_55, %c0_56, %c0_57], %65 {strides = array<i32>} : memref<1x4x8x8xbf16, #tpu.memory_space<vmem>>, vector<1x1x8x8xbf16>,
    %66 = vector.extract_strided_slice %53 {offsets = [0, 24], sizes = [8, 8], strides = [1, 1]} : vector<8x32xbf16> to vector<8x8xbf16>
    %c0_58 = arith.constant 0 : index
    %c3_59 = arith.constant 3 : index
    %c0_60 = arith.constant 0 : index
    %c0_61 = arith.constant 0 : index
    %67 = vector.load %arg11[%c0_58, %c3_59, %c0_60, %c0_61] : memref<1x4x8x8xbf16, #tpu.memory_space<vmem>>, vector<1x1x8x8xbf16>
    %68 = vector.shape_cast %67 : vector<1x1x8x8xbf16> to vector<8x8xbf16>
    %69 = vector.shape_cast %66 : vector<8x8xbf16> to vector<1x1x8x8xbf16>
    tpu.vector_store %arg11[%c0_58, %c3_59, %c0_60, %c0_61], %69 {strides = array<i32>} : memref<1x4x8x8xbf16, #tpu.memory_space<vmem>>, vector<1x1x8x8xbf16>,
    return
  }
  func.func @transform_0(%arg0: i32, %arg1: i32) -> (i32, i32, i32) {
    %c0_i32 = arith.constant 0 : i32
    %c0_i32_0 = arith.constant 0 : i32
    return %arg0, %arg1, %c0_i32 : i32, i32, i32
  }
  func.func @transform_1(%arg0: i32, %arg1: i32) -> (i32, i32) {
    %c0_i32 = arith.constant 0 : i32
    %c0_i32_0 = arith.constant 0 : i32
    %c0_i32_1 = arith.constant 0 : i32
    return %c0_i32, %c0_i32_0 : i32, i32
  }
  func.func @transform_2(%arg0: i32, %arg1: i32) -> (i32, i32) {
    %c0_i32 = arith.constant 0 : i32
    %c0_i32_0 = arith.constant 0 : i32
    %c0_i32_1 = arith.constant 0 : i32
    return %c0_i32, %c0_i32_0 : i32, i32
  }
  func.func @transform_3(%arg0: i32, %arg1: i32) -> (i32, i32) {
    %c0_i32 = arith.constant 0 : i32
    %c0_i32_0 = arith.constant 0 : i32
    %c0_i32_1 = arith.constant 0 : i32
    return %c0_i32, %c0_i32_0 : i32, i32
  }
  func.func @transform_4(%arg0: i32, %arg1: i32) -> (i32, i32) {
    %c0_i32 = arith.constant 0 : i32
    %c0_i32_0 = arith.constant 0 : i32
    %c0_i32_1 = arith.constant 0 : i32
    return %c0_i32, %c0_i32_0 : i32, i32
  }
  func.func @transform_5(%arg0: i32, %arg1: i32) -> (i32, i32) {
    %c0_i32 = arith.constant 0 : i32
    %c0_i32_0 = arith.constant 0 : i32
    %c0_i32_1 = arith.constant 0 : i32
    return %c0_i32, %c0_i32_0 : i32, i32
  }
  func.func @transform_6(%arg0: i32, %arg1: i32) -> (i32, i32) {
    %c0_i32 = arith.constant 0 : i32
    %c0_i32_0 = arith.constant 0 : i32
    %c0_i32_1 = arith.constant 0 : i32
    return %c0_i32, %c0_i32_0 : i32, i32
  }
  func.func @transform_7(%arg0: i32, %arg1: i32) -> (i32, i32, i32, i32) {
    %c0_i32 = arith.constant 0 : i32
    %c0_i32_0 = arith.constant 0 : i32
    %c0_i32_1 = arith.constant 0 : i32
    return %arg0, %c0_i32, %arg1, %c0_i32_0 : i32, i32, i32, i32
  }
  func.func @transform_8(%arg0: i32, %arg1: i32) -> (i32, i32, i32, i32) {
    %c0_i32 = arith.constant 0 : i32
    %c0_i32_0 = arith.constant 0 : i32
    %c0_i32_1 = arith.constant 0 : i32
    return %arg0, %c0_i32, %arg1, %c0_i32_0 : i32, i32, i32, i32
  }
  func.func @transform_9(%arg0: i32, %arg1: i32) -> (i32, i32, i32, i32) {
    %c0_i32 = arith.constant 0 : i32
    %c0_i32_0 = arith.constant 0 : i32
    %c0_i32_1 = arith.constant 0 : i32
    return %arg0, %c0_i32, %arg1, %c0_i32_0 : i32, i32, i32, i32
  }
}

</mosaic_0001>

<llo_original>
// kernel: tpu_custom_call.1
$region0: #{tpu_custom_call.1}
  #allocation0 [shape = 'u32[]', space=smem, size = 0x4, offset = 0x4, fixed_abs, tag = 'smem constant byte address 0x4 - core index']
  #allocation1 [shape = 'u32[144,128]{1,0:T(1,128)}', space=vmem, size = 0x12000, scoped, tag = 'internal scratch']
  %s0 = inlined_call_operand.hbm [shape: bf16[2,8,32], index: 0, kind: input, shape index: {}]
  %s1 = inlined_call_operand.hbm [shape: bf16[32,32], index: 1, kind: input, shape index: {}]
  %s2 = inlined_call_operand.hbm [shape: bf16[32,32], index: 2, kind: input, shape index: {}]
  %s3 = inlined_call_operand.hbm [shape: bf16[32,32], index: 3, kind: input, shape index: {}]
  %s4 = inlined_call_operand.vmem [shape: f32[1,32], index: 4, kind: input, shape index: {}]
  %s5 = inlined_call_operand.vmem [shape: f32[1,32], index: 5, kind: input, shape index: {}]
  %s6 = inlined_call_operand.vmem [shape: f32[1,32], index: 6, kind: input, shape index: {}]
  %s7 = inlined_call_operand.hbm [shape: bf16[2,4,8,8], index: 7, kind: output, shape index: {0}]
  %s8 = inlined_call_operand.hbm [shape: bf16[2,4,8,8], index: 8, kind: output, shape index: {1}]
  %s9 = inlined_call_operand.hbm [shape: bf16[2,4,8,8], index: 9, kind: output, shape index: {2}]
  %10 = xla_tuple %s7, %s8, %s9
  %s11 = sld [smem:[#allocation0]]
  $region93: #{tpu_custom_call.1} parent=0
    _
  %s13 = ssub.s32 1, %s11
  %s14 = scalar_select 0, %s13, %s11
  $region1: #{tpu_custom_call.1} parent=0
    #allocation2 [shape = 'u8[4096]{0}', space=vmem, size = 0x1000, scoped, tag = 'input window, operand 0']
    #allocation3 [shape = 's32[2]{0}', space=sflag, size = 0x8, scoped, tag = 'scoped memory for tpu_custom_call.1']
    #allocation4 [shape = 's32[2]{0}', space=sflag, size = 0x8, scoped, tag = 'scoped memory for tpu_custom_call.1']
    #allocation5 [shape = 'u8[8192]{0}', space=vmem, size = 0x2000, scoped, tag = 'input window, operand 1, single buffered']
    #allocation6 [shape = 's32[1]{0}', space=sflag, size = 0x4, scoped, tag = 'scoped memory for tpu_custom_call.1']
    #allocation7 [shape = 'u8[8192]{0}', space=vmem, size = 0x2000, scoped, tag = 'input window, operand 2, single buffered']
    #allocation8 [shape = 'u8[8192]{0}', space=vmem, size = 0x2000, scoped, tag = 'input window, operand 3, single buffered']
    #allocation9 [shape = 's32[1]{0}', space=sflag, size = 0x4, scoped, tag = 'scoped memory for tpu_custom_call.1']
    #allocation10 [shape = 'u8[16384]{0}', space=vmem, size = 0x4000, scoped, tag = 'output window, operand 0']
    #allocation11 [shape = 'u8[16384]{0}', space=vmem, size = 0x4000, scoped, tag = 'output window, operand 1']
    #allocation12 [shape = 's32[2]{0}', space=sflag, size = 0x8, scoped, tag = 'scoped memory for tpu_custom_call.1']
    #allocation13 [shape = 'u8[16384]{0}', space=vmem, size = 0x4000, scoped, tag = 'output window, operand 2']
    %15 = vsyncpa [#allocation3], 0
    %s16 = scalar_lea.sflag [#allocation3], 1
    %17 = vsyncpa %s16, 0
    %18 = vsyncpa [#allocation6], 0
    %19 = vsyncpa [#allocation9], 0
    %20 = vsyncpa [#allocation4], 0
    %s21 = scalar_lea.sflag [#allocation4], 1
    %22 = vsyncpa %s21, 0
    %23 = vsyncpa [#allocation12], 0
    %s24 = scalar_lea.sflag [#allocation12], 1
    %25 = vsyncpa %s24, 0
    loop: start=0, step=1, limit=4
    $region2: #{tpu_custom_call.1} parent=1 // loop_pre_header
      _
    $region3: #{tpu_custom_call.1} parent=1 // loop_header
      %s27 = sphi 0, %s31
      %p28 = scmp.ge.s32.totalorder %s27, 4
      %s34 = sphi 0, %s46
      %s35 = sphi 0, %s42
      %s36 = sphi 0, %s34
      %s37 = sphi 0, %s35
      %s38 = sphi 0, %s36
      %s39 = sphi 0, %s37
      %s51 = sphi 0, %s53
      %s54 = sphi 0, %s51
      %s55 = sphi 0, %s54
      %s71 = sphi 0, %s55
      %s75 = sphi 0, %s75
      %s77 = sphi 0, %s75
      %s78 = sphi 0, %s77
      %s92 = sphi 0, %s78
      %s96 = sphi 0, %s96
      %s98 = sphi 0, %s96
      %s99 = sphi 0, %s98
      %s113 = sphi 0, %s99
      %s117 = sphi 0, %s117
      %s119 = sphi 0, %s117
      %s120 = sphi 0, %s119
      %s134 = sphi 0, %s120
      %s138 = sphi 0, %s138
      %s140 = sphi 0, %s138
      %s141 = sphi 0, %s140
      %s155 = sphi 0, %s141
      %s159 = sphi 0, %s159
      %s161 = sphi 0, %s159
      %s162 = sphi 0, %s161
      %s176 = sphi 0, %s162
      %s180 = sphi 0, %s180
      %s182 = sphi 0, %s180
      %s183 = sphi 0, %s182
      %s197 = sphi 0, %s183
      %s205 = sphi 0, %s207
      %s208 = sphi 0, %s205
      %s209 = sphi 0, %s208
      %s225 = sphi 0, %s209
      %s233 = sphi 0, %s235
      %s236 = sphi 0, %s233
      %s237 = sphi 0, %s236
      %s253 = sphi 0, %s237
      %s261 = sphi 0, %s263
      %s264 = sphi 0, %s261
      %s265 = sphi 0, %s264
      %s281 = sphi 0, %s265
    $region4: #{tpu_custom_call.1} parent=1 // loop_header_branch
      %30 = sbr.rel (%p28) target = $region8
    $region5: #{tpu_custom_call.1} parent=1 // loop_body
      %s32 = ssub.s32 %s27, 1
      %s33 = ssub.s32 %s27, 2
      %s40 = sadd.s32 1, %s35
      %p41 = scmp.ge.s32.totalorder %s40, 1
      %s42 = scalar_select %p41, 0, %s40
      %s43 = sadd.s32 1, %s34
      %s44 = scalar_select %p41, %s43, %s34
      %p45 = scmp.ge.s32.totalorder %s44, 2
      %s46 = scalar_select %p45, 0, %s44
      %s47 = ssub.s32 %s34, %s46
      %s48 = ssub.s32 %s35, %s42
      %s49 = sor.u32 %s47, %s48
      %p50 = scmp.eq.s32.totalorder %s49, 0
      %s52 = sadd.s32 %s51, 1
      %s53 = scalar_select %p50, %s51, %s52
      %p56 = pneg %p50
      %p57 = scmp.eq.s32.totalorder %s27, 1
      %p58 = por %p56, %p57
      %p59 = scmp.ne.s32.totalorder %s51, %s54
      %p60 = scmp.eq.s32.totalorder %s27, 0
      %p61 = por %p59, %p60
      %p62 = scmp.ne.s32.totalorder %s51, %s54
      %p63 = scmp.eq.s32.totalorder %s32, 1
      %p64 = por %p62, %p63
      %p65 = scmp.ne.s32.totalorder %s54, %s55
      %p66 = scmp.eq.s32.totalorder %s32, 0
      %p67 = por %p65, %p66
      %p68 = scmp.ne.s32.totalorder %s54, %s55
      %p69 = scmp.eq.s32.totalorder %s33, 1
      %p70 = por %p68, %p69
      %p72 = scmp.ne.s32.totalorder %s55, %s71
      %p73 = scmp.eq.s32.totalorder %s33, 0
      %p74 = por %p72, %p73
      %s76 = sadd.s32 %s75, 1
      %p79 = scmp.eq.s32.totalorder %s27, 1
      %p80 = scmp.ne.s32.totalorder %s75, %s77
      %p81 = scmp.eq.s32.totalorder %s27, 0
      %p82 = por %p80, %p81
      %p83 = scmp.ne.s32.totalorder %s75, %s77
      %p84 = scmp.eq.s32.totalorder %s32, 1
      %p85 = por %p83, %p84
      %p86 = scmp.ne.s32.totalorder %s77, %s78
      %p87 = scmp.eq.s32.totalorder %s32, 0
      %p88 = por %p86, %p87
      %p89 = scmp.ne.s32.totalorder %s77, %s78
      %p90 = scmp.eq.s32.totalorder %s33, 1
      %p91 = por %p89, %p90
      %p93 = scmp.ne.s32.totalorder %s78, %s92
      %p94 = scmp.eq.s32.totalorder %s33, 0
      %p95 = por %p93, %p94
      %s97 = sadd.s32 %s96, 1
      %p100 = scmp.eq.s32.totalorder %s27, 1
      %p101 = scmp.ne.s32.totalorder %s96, %s98
      %p102 = scmp.eq.s32.totalorder %s27, 0
      %p103 = por %p101, %p102
      %p104 = scmp.ne.s32.totalorder %s96, %s98
      %p105 = scmp.eq.s32.totalorder %s32, 1
      %p106 = por %p104, %p105
      %p107 = scmp.ne.s32.totalorder %s98, %s99
      %p108 = scmp.eq.s32.totalorder %s32, 0
      %p109 = por %p107, %p108
      %p110 = scmp.ne.s32.totalorder %s98, %s99
      %p111 = scmp.eq.s32.totalorder %s33, 1
      %p112 = por %p110, %p111
      %p114 = scmp.ne.s32.totalorder %s99, %s113
      %p115 = scmp.eq.s32.totalorder %s33, 0
      %p116 = por %p114, %p115
      %s118 = sadd.s32 %s117, 1
      %p121 = scmp.eq.s32.totalorder %s27, 1
      %p122 = scmp.ne.s32.totalorder %s117, %s119
      %p123 = scmp.eq.s32.totalorder %s27, 0
      %p124 = por %p122, %p123
      %p125 = scmp.ne.s32.totalorder %s117, %s119
      %p126 = scmp.eq.s32.totalorder %s32, 1
      %p127 = por %p125, %p126
      %p128 = scmp.ne.s32.totalorder %s119, %s120
      %p129 = scmp.eq.s32.totalorder %s32, 0
      %p130 = por %p128, %p129
      %p131 = scmp.ne.s32.totalorder %s119, %s120
      %p132 = scmp.eq.s32.totalorder %s33, 1
      %p133 = por %p131, %p132
      %p135 = scmp.ne.s32.totalorder %s120, %s134
      %p136 = scmp.eq.s32.totalorder %s33, 0
      %p137 = por %p135, %p136
      %s139 = sadd.s32 %s138, 1
      %p142 = scmp.eq.s32.totalorder %s27, 1
      %p143 = scmp.ne.s32.totalorder %s138, %s140
      %p144 = scmp.eq.s32.totalorder %s27, 0
      %p145 = por %p143, %p144
      %p146 = scmp.ne.s32.totalorder %s138, %s140
      %p147 = scmp.eq.s32.totalorder %s32, 1
      %p148 = por %p146, %p147
      %p149 = scmp.ne.s32.totalorder %s140, %s141
      %p150 = scmp.eq.s32.totalorder %s32, 0
      %p151 = por %p149, %p150
      %p152 = scmp.ne.s32.totalorder %s140, %s141
      %p153 = scmp.eq.s32.totalorder %s33, 1
      %p154 = por %p152, %p153
      %p156 = scmp.ne.s32.totalorder %s141, %s155
      %p157 = scmp.eq.s32.totalorder %s33, 0
      %p158 = por %p156, %p157
      %s160 = sadd.s32 %s159, 1
      %p163 = scmp.eq.s32.totalorder %s27, 1
      %p164 = scmp.ne.s32.totalorder %s159, %s161
      %p165 = scmp.eq.s32.totalorder %s27, 0
      %p166 = por %p164, %p165
      %p167 = scmp.ne.s32.totalorder %s159, %s161
      %p168 = scmp.eq.s32.totalorder %s32, 1
      %p169 = por %p167, %p168
      %p170 = scmp.ne.s32.totalorder %s161, %s162
      %p171 = scmp.eq.s32.totalorder %s32, 0
      %p172 = por %p170, %p171
      %p173 = scmp.ne.s32.totalorder %s161, %s162
      %p174 = scmp.eq.s32.totalorder %s33, 1
      %p175 = por %p173, %p174
      %p177 = scmp.ne.s32.totalorder %s162, %s176
      %p178 = scmp.eq.s32.totalorder %s33, 0
      %p179 = por %p177, %p178
      %s181 = sadd.s32 %s180, 1
      %p184 = scmp.eq.s32.totalorder %s27, 1
      %p185 = scmp.ne.s32.totalorder %s180, %s182
      %p186 = scmp.eq.s32.totalorder %s27, 0
      %p187 = por %p185, %p186
      %p188 = scmp.ne.s32.totalorder %s180, %s182
      %p189 = scmp.eq.s32.totalorder %s32, 1
      %p190 = por %p188, %p189
      %p191 = scmp.ne.s32.totalorder %s182, %s183
      %p192 = scmp.eq.s32.totalorder %s32, 0
      %p193 = por %p191, %p192
      %p194 = scmp.ne.s32.totalorder %s182, %s183
      %p195 = scmp.eq.s32.totalorder %s33, 1
      %p196 = por %p194, %p195
      %p198 = scmp.ne.s32.totalorder %s183, %s197
      %p199 = scmp.eq.s32.totalorder %s33, 0
      %p200 = por %p198, %p199
      %s201 = ssub.s32 %s34, %s46
      %s202 = ssub.s32 %s35, %s42
      %s203 = sor.u32 %s201, %s202
      %p204 = scmp.eq.s32.totalorder %s203, 0
      %s206 = sadd.s32 %s205, 1
      %s207 = scalar_select %p204, %s205, %s206
      %p210 = pneg %p204
      %p211 = scmp.eq.s32.totalorder %s27, 1
      %p212 = por %p210, %p211
      %p213 = scmp.ne.s32.totalorder %s205, %s208
      %p214 = scmp.eq.s32.totalorder %s27, 0
      %p215 = por %p213, %p214
      %p216 = scmp.ne.s32.totalorder %s205, %s208
      %p217 = scmp.eq.s32.totalorder %s32, 1
      %p218 = por %p216, %p217
      %p219 = scmp.ne.s32.totalorder %s208, %s209
      %p220 = scmp.eq.s32.totalorder %s32, 0
      %p221 = por %p219, %p220
      %p222 = scmp.ne.s32.totalorder %s208, %s209
      %p223 = scmp.eq.s32.totalorder %s33, 1
      %p224 = por %p222, %p223
      %p226 = scmp.ne.s32.totalorder %s209, %s225
      %p227 = scmp.eq.s32.totalorder %s33, 0
      %p228 = por %p226, %p227
      %s229 = ssub.s32 %s34, %s46
      %s230 = ssub.s32 %s35, %s42
      %s231 = sor.u32 %s229, %s230
      %p232 = scmp.eq.s32.totalorder %s231, 0
      %s234 = sadd.s32 %s233, 1
      %s235 = scalar_select %p232, %s233, %s234
      %p238 = pneg %p232
      %p239 = scmp.eq.s32.totalorder %s27, 1
      %p240 = por %p238, %p239
      %p241 = scmp.ne.s32.totalorder %s233, %s236
      %p242 = scmp.eq.s32.totalorder %s27, 0
      %p243 = por %p241, %p242
      %p244 = scmp.ne.s32.totalorder %s233, %s236
      %p245 = scmp.eq.s32.totalorder %s32, 1
      %p246 = por %p244, %p245
      %p247 = scmp.ne.s32.totalorder %s236, %s237
      %p248 = scmp.eq.s32.totalorder %s32, 0
      %p249 = por %p247, %p248
      %p250 = scmp.ne.s32.totalorder %s236, %s237
      %p251 = scmp.eq.s32.totalorder %s33, 1
      %p252 = por %p250, %p251
      %p254 = scmp.ne.s32.totalorder %s237, %s253
      %p255 = scmp.eq.s32.totalorder %s33, 0
      %p256 = por %p254, %p255
      %s257 = ssub.s32 %s34, %s46
      %s258 = ssub.s32 %s35, %s42
      %s259 = sor.u32 %s257, %s258
      %p260 = scmp.eq.s32.totalorder %s259, 0
      %s262 = sadd.s32 %s261, 1
      %s263 = scalar_select %p260, %s261, %s262
      %p266 = pneg %p260
      %p267 = scmp.eq.s32.totalorder %s27, 1
      %p268 = por %p266, %p267
      %p269 = scmp.ne.s32.totalorder %s261, %s264
      %p270 = scmp.eq.s32.totalorder %s27, 0
      %p271 = por %p269, %p270
      %p272 = scmp.ne.s32.totalorder %s261, %s264
      %p273 = scmp.eq.s32.totalorder %s32, 1
      %p274 = por %p272, %p273
      %p275 = scmp.ne.s32.totalorder %s264, %s265
      %p276 = scmp.eq.s32.totalorder %s32, 0
      %p277 = por %p275, %p276
      %p278 = scmp.ne.s32.totalorder %s264, %s265
      %p279 = scmp.eq.s32.totalorder %s33, 1
      %p280 = por %p278, %p279
      %p282 = scmp.ne.s32.totalorder %s265, %s281
      %p283 = scmp.eq.s32.totalorder %s33, 0
      %p284 = por %p282, %p283
      %p285 = scmp.le.s32.totalorder 1, %s27
      %p286 = scmp.lt.s32.totalorder %s27, 3
      %p287 = pnand %p285, %p286
      %p288 = pneg %p287
      // Predicated region
      $region9: #{tpu_custom_call.1} parent=5 // pred_check
        _
      $region10: #{tpu_custom_call.1} parent=5 // pred_check_branch
        %290 = sbr.rel (%p287) target = $region12
      $region11: #{tpu_custom_call.1} parent=5 // pred_region
        %s291 = ssub.s32 %s27, 1
        // Predicated region
        $region13: #{tpu_custom_call.1} parent=11 // pred_check
          %p292 = pneg %p88
        $region14: #{tpu_custom_call.1} parent=11 // pred_check_branch
          %294 = sbr.rel (%p292) target = $region16
        $region15: #{tpu_custom_call.1} parent=11 // pred_region
          %s296 = ssub.s32 256, 256
          %297 = vsyncadd [#allocation6], %s296
          %s298 = sshll.u32 [#allocation5], 4
          %s299 = int_to_ptr.vmem [resolvable:$true] %s298
          %304 = dma.hbm_to_vmem [thread:$0]  %s1, 256, %s299, [#allocation6], 64, 64, 4
        $region16: #{tpu_custom_call.1} parent=11 // pred_fallthru
          _
        // Predicated region
        $region17: #{tpu_custom_call.1} parent=11 // pred_check
          %p305 = pneg %p109
        $region18: #{tpu_custom_call.1} parent=11 // pred_check_branch
          %307 = sbr.rel (%p305) target = $region20
        $region19: #{tpu_custom_call.1} parent=11 // pred_region
          %s309 = ssub.s32 256, 256
          %310 = vsyncadd [#allocation6], %s309
          %s311 = sshll.u32 [#allocation7], 4
          %s312 = int_to_ptr.vmem [resolvable:$true] %s311
          %317 = dma.hbm_to_vmem [thread:$0]  %s2, 256, %s312, [#allocation6], 64, 64, 4
        $region20: #{tpu_custom_call.1} parent=11 // pred_fallthru
          _
        // Predicated region
        $region21: #{tpu_custom_call.1} parent=11 // pred_check
          %p318 = pneg %p130
        $region22: #{tpu_custom_call.1} parent=11 // pred_check_branch
          %320 = sbr.rel (%p318) target = $region24
        $region23: #{tpu_custom_call.1} parent=11 // pred_region
          %s322 = ssub.s32 256, 256
          %323 = vsyncadd [#allocation9], %s322
          %s324 = sshll.u32 [#allocation8], 4
          %s325 = int_to_ptr.vmem [resolvable:$true] %s324
          %330 = dma.hbm_to_vmem [thread:$0]  %s3, 256, %s325, [#allocation9], 64, 64, 4
        $region24: #{tpu_custom_call.1} parent=11 // pred_fallthru
          _
        // Predicated region
        $region25: #{tpu_custom_call.1} parent=11 // pred_check
          %p331 = pneg %p151
        $region26: #{tpu_custom_call.1} parent=11 // pred_check_branch
          %333 = sbr.rel (%p331) target = $region28
        $region27: #{tpu_custom_call.1} parent=11 // pred_region
          _
        $region28: #{tpu_custom_call.1} parent=11 // pred_fallthru
          _
        // Predicated region
        $region29: #{tpu_custom_call.1} parent=11 // pred_check
          %p334 = pneg %p172
        $region30: #{tpu_custom_call.1} parent=11 // pred_check_branch
          %336 = sbr.rel (%p334) target = $region32
        $region31: #{tpu_custom_call.1} parent=11 // pred_region
          _
        $region32: #{tpu_custom_call.1} parent=11 // pred_fallthru
          _
        // Predicated region
        $region33: #{tpu_custom_call.1} parent=11 // pred_check
          %p337 = pneg %p193
        $region34: #{tpu_custom_call.1} parent=11 // pred_check_branch
          %339 = sbr.rel (%p337) target = $region36
        $region35: #{tpu_custom_call.1} parent=11 // pred_region
          _
        $region36: #{tpu_custom_call.1} parent=11 // pred_fallthru
          _
      $region12: #{tpu_custom_call.1} parent=5 // pred_fallthru
        _
      %p340 = scmp.lt.s32.totalorder %s27, 2
      // Predicated region
      $region37: #{tpu_custom_call.1} parent=5 // pred_check
        %p341 = pneg %p340
      $region38: #{tpu_custom_call.1} parent=5 // pred_check_branch
        %343 = sbr.rel (%p341) target = $region40
      $region39: #{tpu_custom_call.1} parent=5 // pred_region
        // Predicated region
        $region41: #{tpu_custom_call.1} parent=39 // pred_check
          %p344 = pneg %p61
        $region42: #{tpu_custom_call.1} parent=39 // pred_check_branch
          %346 = sbr.rel (%p344) target = $region44
        $region43: #{tpu_custom_call.1} parent=39 // pred_region
          %s347 = sand.u32 %s51, 1
          %s348 = scalar_lea.sflag [#allocation3], %s347
          %s349 = sand.u32 %s51, 1
          %s350 = smul.addr %s349, 4
          %s351 = scalar_lea.vmem [#allocation2], %s350
          %s353 = ssub.s32 64, 64
          %354 = vsyncadd %s348, %s353
          %s355 = sadd.s32 %s35, %s34
          %s356 = smul.addr %s355, 64
          %s357 = scalar_lea.hbm %s0, %s356
          %s359 = sshll.u32 %s351, 4
          %s360 = int_to_ptr.vmem [resolvable:$true] %s359
          %362 = dma.hbm_to_vmem [thread:$0]  %s357, 64, %s360, %s348
        $region44: #{tpu_custom_call.1} parent=39 // pred_fallthru
          _
      $region40: #{tpu_custom_call.1} parent=5 // pred_fallthru
        _
      %p363 = scmp.le.s32.totalorder 1, %s27
      %p364 = scmp.lt.s32.totalorder %s27, 3
      %p365 = pnand %p363, %p364
      %p366 = pneg %p365
      // Predicated region
      $region45: #{tpu_custom_call.1} parent=5 // pred_check
        _
      $region46: #{tpu_custom_call.1} parent=5 // pred_check_branch
        %368 = sbr.rel (%p365) target = $region48
      $region47: #{tpu_custom_call.1} parent=5 // pred_region
        %s369 = ssub.s32 %s27, 1
        %s370 = sand.u32 %s54, 1
        %s371 = scalar_lea.sflag [#allocation3], %s370
        %s372 = sand.u32 %s54, 1
        %s373 = smul.addr %s372, 4
        %s374 = scalar_lea.vmem [#allocation2], %s373
        // Predicated region
        $region49: #{tpu_custom_call.1} parent=47 // pred_check
          %p375 = pneg %p67
        $region50: #{tpu_custom_call.1} parent=47 // pred_check_branch
          %377 = sbr.rel (%p375) target = $region52
        $region51: #{tpu_custom_call.1} parent=47 // pred_region
          %378 = dma.done %s371, 64
        $region52: #{tpu_custom_call.1} parent=47 // pred_fallthru
          _
        // Predicated region
        $region53: #{tpu_custom_call.1} parent=47 // pred_check
          %p379 = pneg %p88
        $region54: #{tpu_custom_call.1} parent=47 // pred_check_branch
          %381 = sbr.rel (%p379) target = $region56
        $region55: #{tpu_custom_call.1} parent=47 // pred_region
          %382 = dma.done [#allocation6], 256
        $region56: #{tpu_custom_call.1} parent=47 // pred_fallthru
          _
        // Predicated region
        $region57: #{tpu_custom_call.1} parent=47 // pred_check
          %p383 = pneg %p109
        $region58: #{tpu_custom_call.1} parent=47 // pred_check_branch
          %385 = sbr.rel (%p383) target = $region60
        $region59: #{tpu_custom_call.1} parent=47 // pred_region
          %386 = dma.done [#allocation6], 256
        $region60: #{tpu_custom_call.1} parent=47 // pred_fallthru
          _
        // Predicated region
        $region61: #{tpu_custom_call.1} parent=47 // pred_check
          %p387 = pneg %p130
        $region62: #{tpu_custom_call.1} parent=47 // pred_check_branch
          %389 = sbr.rel (%p387) target = $region64
        $region63: #{tpu_custom_call.1} parent=47 // pred_region
          %390 = dma.done [#allocation9], 256
        $region64: #{tpu_custom_call.1} parent=47 // pred_fallthru
          _
        %s391 = sand.u32 %s54, 1
        %s392 = scalar_lea.sflag [#allocation3], %s391
        %s393 = sand.u32 %s54, 1
        %s394 = smul.addr %s393, 4
        %s395 = scalar_lea.vmem [#allocation2], %s394
        %p396 = pneg %p67
        %p397 = pneg %p64
        %p398 = pneg %p88
        %p399 = pneg %p85
        %p400 = pneg %p109
        %p401 = pneg %p106
        %p402 = pneg %p130
        %p403 = pneg %p127
        %p404 = pneg %p151
        %p405 = pneg %p148
        %p406 = pneg %p172
        %p407 = pneg %p169
        %p408 = pneg %p193
        %p409 = pneg %p190
        %p410 = pneg %p221
        %p411 = pneg %p218
        %s412 = sand.u32 %s208, 1
        %s413 = scalar_lea.sflag [#allocation4], %s412
        %s414 = sand.u32 %s208, 1
        %s415 = smul.addr %s414, 16
        %s416 = scalar_lea.vmem [#allocation10], %s415
        %p417 = pneg %p249
        %p418 = pneg %p246
        %s419 = sand.u32 %s32, 1
        %s420 = scalar_lea.sflag [#allocation12], %s419
        %s421 = sand.u32 %s236, 1
        %s422 = smul.addr %s421, 16
        %s423 = scalar_lea.vmem [#allocation11], %s422
        %p424 = pneg %p277
        %p425 = pneg %p274
        %s426 = sand.u32 %s32, 1
        %s427 = scalar_lea.sflag [#allocation12], %s426
        %s428 = sand.u32 %s264, 1
        %s429 = smul.addr %s428, 16
        %s430 = scalar_lea.vmem [#allocation13], %s429
        %v432 = vld [vmem:[%s374] sm:$0xf]
        %v433 = vld [vmem:[#allocation5] sm:$0xf]
        %v434 = vld [vmem:[#allocation5 + $0x4] sm:$0xf]
        %v435 = vld [vmem:[#allocation5 + $0x8] sm:$0xf]
        %v436 = vld [vmem:[#allocation5 + $0xc] sm:$0xf]
        %v437 = vld [vmem:[%s4] sm:$0x1]
        %v439 = vlaneseq
        %v440 = vshrl.u32 %v439, 7
        %v441 = vsub.s32 0, %v440
        %v442 = vrot.slane %v437, %v441
        %v448 = vunpack.c.l.b16 %v433
        %v449 = vunpack.c.l.b16 %v434
        %v450 = vunpack.c.l.b16 %v435
        %v451 = vunpack.c.l.b16 %v436
        %v452 = vpack.c.b16 %v449, %v448
        %v453 = vpack.c.b16 %v451, %v450
        %vm456 = vcmask 261120
        %v458 = vsel %vm456, %v432, 0
        %460 = vmatprep.subr.bf16.mxu0 0
        %461 = vmatpush1.bf16.msra.mxu0 0
        %462 = vmatprep.subr.bf16.mxu0 0
        %463 = vmatpush1.bf16.msra.mxu0 0
        %464 = vmatprep.subr.bf16.mxu0 0
        %465 = vmatpush1.bf16.msra.mxu0 0
        %466 = vmatprep.subr.bf16.mxu0 0
        %467 = vmatpush1.bf16.msra.mxu0 0
        %468 = vmatprep.subr.bf16.mxu0 0
        %469 = vmatpush1.bf16.msra.mxu0 0
        %470 = vmatprep.subr.bf16.mxu0 0
        %471 = vmatpush1.bf16.msra.mxu0 0
        %472 = vmatprep.subr.bf16.mxu0 0
        %473 = vmatpush1.bf16.msra.mxu0 %v453
        %474 = vmatprep.subr.bf16.mxu0 0
        %475 = vmatpush1.bf16.msra.mxu0 %v452
        %476 = vmatprep.subr.bf16.mxu0 0
        %477 = vmatpush2.bf16.msra.mxu0 0
        %478 = vmatprep.subr.bf16.mxu0 0
        %479 = vmatpush2.bf16.msra.mxu0 0
        %480 = vmatprep.subr.bf16.mxu0 0
        %481 = vmatpush2.bf16.msra.mxu0 0
        %482 = vmatprep.subr.bf16.mxu0 0
        %483 = vmatpush2.bf16.msra.mxu0 0
        %484 = vmatprep.subr.bf16.mxu0 0
        %485 = vmatpush2.bf16.msra.mxu0 0
        %486 = vmatprep.subr.bf16.mxu0 0
        %487 = vmatpush2.bf16.msra.mxu0 0
        %488 = vmatprep.subr.bf16.mxu0 0
        %489 = vmatpush2.bf16.msra.mxu0 0
        %490 = vmatprep.subr.bf16.mxu0 0
        %491 = vmatpush2.bf16.msra.mxu0 0
        %492 = vmatprep.mubr.bf16.mxu0 0
        %493 = vmatmul.mubr.bf16.gmra.mxu0 %v458
        %v494 = vpop.f32.mrf.mxu0
        %v495 = vadd.f32 %v442, %v494
        %v496 = vpop.f32.mrf.mxu0
        %v497 = vpop.f32.mrf.mxu0
        %v498 = vpop.f32.mrf.mxu0
        %499 = vdwg.mxu0
        %v500 = vmul.f32 %v495, 0.35355338
        %v501 = vpack.c.bf16 %v500, %v500
        %vm502 = vcmask 60416
        %503 = vst.msk [vmem:[%s416] sm:$0xf] %vm502, %v501
        %v505 = vunpack.c.l.b16 %v501
        %v506 = vpack.c.b16 %v505, %v505
        %507 = vrot.lane.b32.xlu0 %v506, 120
        %v508 = vpop.permute.xlu0 %507
        %s510 = scalar_lea.vmem %s416, 4 [#allocation10]
        %511 = vst.msk [vmem:[%s510] sm:$0xf] %vm502, %v508
        %512 = vrot.lane.b32.xlu0 %v506, 112
        %v513 = vpop.permute.xlu0 %512
        %s515 = scalar_lea.vmem %s416, 8 [#allocation10]
        %516 = vst.msk [vmem:[%s515] sm:$0xf] %vm502, %v513
        %517 = vrot.lane.b32.xlu0 %v506, 104
        %v518 = vpop.permute.xlu0 %517
        %s520 = scalar_lea.vmem %s416, 12 [#allocation10]
        %521 = vst.msk [vmem:[%s520] sm:$0xf] %vm502, %v518
        %v522 = vld [vmem:[#allocation7] sm:$0xf]
        %v523 = vld [vmem:[#allocation7 + $0x4] sm:$0xf]
        %v524 = vld [vmem:[#allocation7 + $0x8] sm:$0xf]
        %v525 = vld [vmem:[#allocation7 + $0xc] sm:$0xf]
        %v526 = vld [vmem:[%s5] sm:$0x1]
        %v528 = vlaneseq
        %v529 = vshrl.u32 %v528, 7
        %v530 = vsub.s32 0, %v529
        %v531 = vrot.slane %v526, %v530
        %v537 = vunpack.c.l.b16 %v522
        %v538 = vunpack.c.l.b16 %v523
        %v539 = vunpack.c.l.b16 %v524
        %v540 = vunpack.c.l.b16 %v525
        %v541 = vpack.c.b16 %v538, %v537
        %v542 = vpack.c.b16 %v540, %v539
        %545 = vmatprep.subr.bf16.mxu0 0
        %546 = vmatpush1.bf16.msra.mxu0 0
        %547 = vmatprep.subr.bf16.mxu0 0
        %548 = vmatpush1.bf16.msra.mxu0 0
        %549 = vmatprep.subr.bf16.mxu0 0
        %550 = vmatpush1.bf16.msra.mxu0 0
        %551 = vmatprep.subr.bf16.mxu0 0
        %552 = vmatpush1.bf16.msra.mxu0 0
        %553 = vmatprep.subr.bf16.mxu0 0
        %554 = vmatpush1.bf16.msra.mxu0 0
        %555 = vmatprep.subr.bf16.mxu0 0
        %556 = vmatpush1.bf16.msra.mxu0 0
        %557 = vmatprep.subr.bf16.mxu0 0
        %558 = vmatpush1.bf16.msra.mxu0 %v542
        %559 = vmatprep.subr.bf16.mxu0 0
        %560 = vmatpush1.bf16.msra.mxu0 %v541
        %561 = vmatprep.subr.bf16.mxu0 0
        %562 = vmatpush2.bf16.msra.mxu0 0
        %563 = vmatprep.subr.bf16.mxu0 0
        %564 = vmatpush2.bf16.msra.mxu0 0
        %565 = vmatprep.subr.bf16.mxu0 0
        %566 = vmatpush2.bf16.msra.mxu0 0
        %567 = vmatprep.subr.bf16.mxu0 0
        %568 = vmatpush2.bf16.msra.mxu0 0
        %569 = vmatprep.subr.bf16.mxu0 0
        %570 = vmatpush2.bf16.msra.mxu0 0
        %571 = vmatprep.subr.bf16.mxu0 0
        %572 = vmatpush2.bf16.msra.mxu0 0
        %573 = vmatprep.subr.bf16.mxu0 0
        %574 = vmatpush2.bf16.msra.mxu0 0
        %575 = vmatprep.subr.bf16.mxu0 0
        %576 = vmatpush2.bf16.msra.mxu0 0
        %577 = vmatprep.mubr.bf16.mxu0 0
        %578 = vmatmul.mubr.bf16.gmra.mxu0 %v458
        %v579 = vpop.f32.mrf.mxu0
        %v580 = vadd.f32 %v531, %v579
        %v581 = vpop.f32.mrf.mxu0
        %v582 = vpop.f32.mrf.mxu0
        %v583 = vpop.f32.mrf.mxu0
        %584 = vdwg.mxu0
        %v585 = vpack.c.bf16 %v580, %v580
        %586 = vst.msk [vmem:[%s423] sm:$0xf] %vm502, %v585
        %v588 = vunpack.c.l.b16 %v585
        %v589 = vpack.c.b16 %v588, %v588
        %590 = vrot.lane.b32.xlu0 %v589, 120
        %v591 = vpop.permute.xlu0 %590
        %s593 = scalar_lea.vmem %s423, 4 [#allocation11]
        %594 = vst.msk [vmem:[%s593] sm:$0xf] %vm502, %v591
        %595 = vrot.lane.b32.xlu0 %v589, 112
        %v596 = vpop.permute.xlu0 %595
        %s598 = scalar_lea.vmem %s423, 8 [#allocation11]
        %599 = vst.msk [vmem:[%s598] sm:$0xf] %vm502, %v596
        %600 = vrot.lane.b32.xlu0 %v589, 104
        %v601 = vpop.permute.xlu0 %600
        %s603 = scalar_lea.vmem %s423, 12 [#allocation11]
        %604 = vst.msk [vmem:[%s603] sm:$0xf] %vm502, %v601
        %v605 = vld [vmem:[#allocation8] sm:$0xf]
        %v606 = vld [vmem:[#allocation8 + $0x4] sm:$0xf]
        %v607 = vld [vmem:[#allocation8 + $0x8] sm:$0xf]
        %v608 = vld [vmem:[#allocation8 + $0xc] sm:$0xf]
        %v609 = vld [vmem:[%s6] sm:$0x1]
        %v611 = vlaneseq
        %v612 = vshrl.u32 %v611, 7
        %v613 = vsub.s32 0, %v612
        %v614 = vrot.slane %v609, %v613
        %v620 = vunpack.c.l.b16 %v605
        %v621 = vunpack.c.l.b16 %v606
        %v622 = vunpack.c.l.b16 %v607
        %v623 = vunpack.c.l.b16 %v608
        %v624 = vpack.c.b16 %v621, %v620
        %v625 = vpack.c.b16 %v623, %v622
        %628 = vmatprep.subr.bf16.mxu0 0
        %629 = vmatpush1.bf16.msra.mxu0 0
        %630 = vmatprep.subr.bf16.mxu0 0
        %631 = vmatpush1.bf16.msra.mxu0 0
        %632 = vmatprep.subr.bf16.mxu0 0
        %633 = vmatpush1.bf16.msra.mxu0 0
        %634 = vmatprep.subr.bf16.mxu0 0
        %635 = vmatpush1.bf16.msra.mxu0 0
        %636 = vmatprep.subr.bf16.mxu0 0
        %637 = vmatpush1.bf16.msra.mxu0 0
        %638 = vmatprep.subr.bf16.mxu0 0
        %639 = vmatpush1.bf16.msra.mxu0 0
        %640 = vmatprep.subr.bf16.mxu0 0
        %641 = vmatpush1.bf16.msra.mxu0 %v625
        %642 = vmatprep.subr.bf16.mxu0 0
        %643 = vmatpush1.bf16.msra.mxu0 %v624
        %644 = vmatprep.subr.bf16.mxu0 0
        %645 = vmatpush2.bf16.msra.mxu0 0
        %646 = vmatprep.subr.bf16.mxu0 0
        %647 = vmatpush2.bf16.msra.mxu0 0
        %648 = vmatprep.subr.bf16.mxu0 0
        %649 = vmatpush2.bf16.msra.mxu0 0
        %650 = vmatprep.subr.bf16.mxu0 0
        %651 = vmatpush2.bf16.msra.mxu0 0
        %652 = vmatprep.subr.bf16.mxu0 0
        %653 = vmatpush2.bf16.msra.mxu0 0
        %654 = vmatprep.subr.bf16.mxu0 0
        %655 = vmatpush2.bf16.msra.mxu0 0
        %656 = vmatprep.subr.bf16.mxu0 0
        %657 = vmatpush2.bf16.msra.mxu0 0
        %658 = vmatprep.subr.bf16.mxu0 0
        %659 = vmatpush2.bf16.msra.mxu0 0
        %660 = vmatprep.mubr.bf16.mxu0 0
        %661 = vmatmul.mubr.bf16.gmra.mxu0 %v458
        %v662 = vpop.f32.mrf.mxu0
        %v663 = vadd.f32 %v614, %v662
        %v664 = vpop.f32.mrf.mxu0
        %v665 = vpop.f32.mrf.mxu0
        %v666 = vpop.f32.mrf.mxu0
        %667 = vdwg.mxu0
        %v668 = vpack.c.bf16 %v663, %v663
        %669 = vst.msk [vmem:[%s430] sm:$0xf] %vm502, %v668
        %v671 = vunpack.c.l.b16 %v668
        %v672 = vpack.c.b16 %v671, %v671
        %673 = vrot.lane.b32.xlu0 %v672, 120
        %v674 = vpop.permute.xlu0 %673
        %s676 = scalar_lea.vmem %s430, 4 [#allocation13]
        %677 = vst.msk [vmem:[%s676] sm:$0xf] %vm502, %v674
        %678 = vrot.lane.b32.xlu0 %v672, 112
        %v679 = vpop.permute.xlu0 %678
        %s681 = scalar_lea.vmem %s430, 8 [#allocation13]
        %682 = vst.msk [vmem:[%s681] sm:$0xf] %vm502, %v679
        %683 = vrot.lane.b32.xlu0 %v672, 104
        %v684 = vpop.permute.xlu0 %683
        %s686 = scalar_lea.vmem %s430, 12 [#allocation13]
        %687 = vst.msk [vmem:[%s686] sm:$0xf] %vm502, %v684
        %s688 = sand.u32 %s208, 1
        %s689 = scalar_lea.sflag [#allocation4], %s688
        %s690 = sand.u32 %s208, 1
        %s691 = smul.addr %s690, 16
        %s692 = scalar_lea.vmem [#allocation10], %s691
        %s693 = sand.u32 %s32, 1
        %s694 = scalar_lea.sflag [#allocation12], %s693
        %s695 = sand.u32 %s236, 1
        %s696 = smul.addr %s695, 16
        %s697 = scalar_lea.vmem [#allocation11], %s696
        %s698 = sand.u32 %s32, 1
        %s699 = scalar_lea.sflag [#allocation12], %s698
        %s700 = sand.u32 %s264, 1
        %s701 = smul.addr %s700, 16
        %s702 = scalar_lea.vmem [#allocation13], %s701
        // Predicated region
        $region65: #{tpu_custom_call.1} parent=47 // pred_check
          %p703 = pneg %p218
        $region66: #{tpu_custom_call.1} parent=47 // pred_check_branch
          %705 = sbr.rel (%p703) target = $region68
        $region67: #{tpu_custom_call.1} parent=47 // pred_region
          %s707 = ssub.s32 256, 256
          %708 = vsyncadd %s689, %s707
          %s709 = smul.addr %s36, 4
          %s710 = sadd.s32 %s37, %s709
          %s711 = smul.addr %s710, 64
          %s712 = scalar_lea.hbm %s7, %s711
          %s713 = sshll.u32 %s692, 4
          %s714 = int_to_ptr.vmem [resolvable:$true] %s713
          %719 = dma.vmem_to_hbm [thread:$0]  %s714, 256, %s712, %s689, 64, 64, 4
        $region68: #{tpu_custom_call.1} parent=47 // pred_fallthru
          _
        // Predicated region
        $region69: #{tpu_custom_call.1} parent=47 // pred_check
          %p720 = pneg %p246
        $region70: #{tpu_custom_call.1} parent=47 // pred_check_branch
          %722 = sbr.rel (%p720) target = $region72
        $region71: #{tpu_custom_call.1} parent=47 // pred_region
          %s724 = ssub.s32 256, 256
          %725 = vsyncadd %s694, %s724
          %s726 = smul.addr %s36, 4
          %s727 = sadd.s32 %s37, %s726
          %s728 = smul.addr %s727, 64
          %s729 = scalar_lea.hbm %s8, %s728
          %s730 = sshll.u32 %s697, 4
          %s731 = int_to_ptr.vmem [resolvable:$true] %s730
          %736 = dma.vmem_to_hbm [thread:$0]  %s731, 256, %s729, %s694, 64, 64, 4
        $region72: #{tpu_custom_call.1} parent=47 // pred_fallthru
          _
        // Predicated region
        $region73: #{tpu_custom_call.1} parent=47 // pred_check
          %p737 = pneg %p274
        $region74: #{tpu_custom_call.1} parent=47 // pred_check_branch
          %739 = sbr.rel (%p737) target = $region76
        $region75: #{tpu_custom_call.1} parent=47 // pred_region
          %s741 = ssub.s32 256, 256
          %742 = vsyncadd %s699, %s741
          %s743 = smul.addr %s36, 4
          %s744 = sadd.s32 %s37, %s743
          %s745 = smul.addr %s744, 64
          %s746 = scalar_lea.hbm %s9, %s745
          %s747 = sshll.u32 %s702, 4
          %s748 = int_to_ptr.vmem [resolvable:$true] %s747
          %753 = dma.vmem_to_hbm [thread:$0]  %s748, 256, %s746, %s699, 64, 64, 4
        $region76: #{tpu_custom_call.1} parent=47 // pred_fallthru
          _
      $region48: #{tpu_custom_call.1} parent=5 // pred_fallthru
        _
      %p754 = scmp.le.s32.totalorder 2, %s27
      // Predicated region
      $region77: #{tpu_custom_call.1} parent=5 // pred_check
        %p755 = pneg %p754
      $region78: #{tpu_custom_call.1} parent=5 // pred_check_branch
        %757 = sbr.rel (%p755) target = $region80
      $region79: #{tpu_custom_call.1} parent=5 // pred_region
        %s758 = ssub.s32 %s27, 2
        // Predicated region
        $region81: #{tpu_custom_call.1} parent=79 // pred_check
          %p759 = pneg %p224
        $region82: #{tpu_custom_call.1} parent=79 // pred_check_branch
          %761 = sbr.rel (%p759) target = $region84
        $region83: #{tpu_custom_call.1} parent=79 // pred_region
          %s762 = sand.u32 %s209, 1
          %s763 = scalar_lea.sflag [#allocation4], %s762
          %s764 = sand.u32 %s209, 1
          %s765 = smul.addr %s764, 16
          %s766 = scalar_lea.vmem [#allocation10], %s765
          %767 = dma.done %s763, 256
        $region84: #{tpu_custom_call.1} parent=79 // pred_fallthru
          _
        // Predicated region
        $region85: #{tpu_custom_call.1} parent=79 // pred_check
          %p768 = pneg %p252
        $region86: #{tpu_custom_call.1} parent=79 // pred_check_branch
          %770 = sbr.rel (%p768) target = $region88
        $region87: #{tpu_custom_call.1} parent=79 // pred_region
          %s771 = sand.u32 %s33, 1
          %s772 = scalar_lea.sflag [#allocation12], %s771
          %s773 = sand.u32 %s237, 1
          %s774 = smul.addr %s773, 16
          %s775 = scalar_lea.vmem [#allocation11], %s774
          %776 = dma.done %s772, 256
        $region88: #{tpu_custom_call.1} parent=79 // pred_fallthru
          _
        // Predicated region
        $region89: #{tpu_custom_call.1} parent=79 // pred_check
          %p777 = pneg %p280
        $region90: #{tpu_custom_call.1} parent=79 // pred_check_branch
          %779 = sbr.rel (%p777) target = $region92
        $region91: #{tpu_custom_call.1} parent=79 // pred_region
          %s780 = sand.u32 %s33, 1
          %s781 = scalar_lea.sflag [#allocation12], %s780
          %s782 = sand.u32 %s265, 1
          %s783 = smul.addr %s782, 16
          %s784 = scalar_lea.vmem [#allocation13], %s783
          %785 = dma.done %s781, 256
        $region92: #{tpu_custom_call.1} parent=79 // pred_fallthru
          _
      $region80: #{tpu_custom_call.1} parent=5 // pred_fallthru
        _
    $region6: #{tpu_custom_call.1} parent=1 // loop_footer
      %s31 = sadd.s32 1, %s27
    $region7: #{tpu_custom_call.1} parent=1 // loop_footer_branch
      %26 = sbr.rel target = $region3
    $region8: #{tpu_custom_call.1} parent=1 // loop_exit
      _
    %786 = vsyncpa [#allocation3], 1
    %s787 = scalar_lea.sflag [#allocation3], 1
    %788 = vsyncpa %s787, 1
    %789 = vsyncpa [#allocation6], 1
    %790 = vsyncpa [#allocation9], 1
    %791 = vsyncpa [#allocation4], 1
    %s792 = scalar_lea.sflag [#allocation4], 1
    %793 = vsyncpa %s792, 1
    %794 = vsyncpa [#allocation12], 1
    %s795 = scalar_lea.sflag [#allocation12], 1
    %796 = vsyncpa %s795, 1

</llo_original>
